<compile_context>
chip_gen: v7x
topology: tpu7x:2x2x1
jax: 0.10.0
libtpu: 0.0.40
codegen_flags: <defaults>
</compile_context>

<pallas_src>
import functools

import jax
import jax.numpy as jnp
from jax.experimental import pallas as pl
from jax.experimental.pallas import tpu as pltpu


def _round_up(x, m):
    return -(-x // m) * m


def temporal_attention_kernel(x_ref, wt_ref, b_ref, v_ref, o_ref, *, t_valid):
    # x_ref : (TB, Tp, Hp)  block of TB batch elements of `features` (zero-padded)
    # wt_ref: (Hp, Hp)      W transposed, bf16 (so x @ wt == x @ W.T)
    # b_ref : (1, Hp)       Linear bias row, f32 (zero-padded lanes)
    # v_ref : (1, Hp)       attention vector row, f32 (zero-padded lanes)
    # o_ref : (TB, Hp)      context output block
    TB, Tp, Hp = x_ref.shape

    x = x_ref[...]                                               # (TB, Tp, Hp) f32

    # ---- uh = tanh(x @ W.T + b): one big MXU matmul, bf16 in / f32 acc ------
    x2 = x.reshape(TB * Tp, Hp).astype(jnp.bfloat16)             # dense relayout
    uh = jnp.tanh(
        jnp.dot(x2, wt_ref[...], preferred_element_type=jnp.float32)
        + b_ref[...]
    )                                                            # (TB*Tp, Hp) f32
    uh3 = uh.reshape(TB, Tp, Hp)

    # ---- scores = uh . v : VPU multiply + lane reduction (no N=1 matmul) ----
    scores = jnp.sum(uh3 * v_ref[...], axis=-1, keepdims=True)   # (TB, Tp, 1)

    # ---- mask padded time steps (zero rows would contribute tanh(b).v) ------
    if t_valid < Tp:
        t_idx = jax.lax.broadcasted_iota(jnp.int32, (TB, Tp, 1), 1)
        scores = jnp.where(t_idx < t_valid, scores, -jnp.inf)

    # ---- softmax over time, normalization folded into the context -----------
    m = jnp.max(scores, axis=1, keepdims=True)                   # (TB, 1, 1)
    e = jnp.exp(scores - m)                                      # (TB, Tp, 1)
    denom = jnp.sum(e, axis=1)                                   # (TB, 1)

    # ---- context = softmax(scores)^T @ x via multiply + sublane reduce ------
    ctx_un = jnp.sum(e * x, axis=1)                              # (TB, Hp)
    ctx = ctx_un * pl.reciprocal(denom, approx=True)             # EUP slot
    o_ref[...] = ctx.astype(o_ref.dtype)


def _tpu_vmem_capacity_bytes():
    try:
        info = pltpu.get_tpu_info()
        cap = getattr(info, "vmem_capacity_bytes", None)
        if cap:
            return int(cap)
    except Exception:
        pass
    return 64 * 1024 * 1024  # conservative: v7x per-TensorCore VMEM


def _choose_block_b(B, Tp, Hp, itemsize, block_budget, two_cores):
    """Pick the batch-block size TB from a lane-padding-aware VMEM model."""
    # Per-batch-element VMEM footprint (using the padded Tp/Hp shapes that are
    # actually materialized in VMEM):
    #   2x feature tile (double-buffered input)    : 2 * Tp*Hp*itemsize
    #   bf16 copy fed to the MXU                   :     Tp*Hp*2
    #   f32 uh                                     :     Tp*Hp*4
    #   f32 e*x product before the time reduction  :     Tp*Hp*4
    #   scores/exp/ctx rows + double-buffered out  : ~12 * Hp*4
    per_elem = Tp * Hp * (2 * itemsize + 2 + 4 + 4) + 12 * Hp * 4
    tb = max(1, block_budget // max(per_elem, 1))
    if two_cores:
        # keep >= 2 grid steps when possible so both v7x TensorCores get work
        tb = min(tb, _round_up(-(-B // 2), 8))
    tb = min(tb, _round_up(B, 8))
    tb = max(8, (tb // 8) * 8)   # multiple of 8 -> sublane-dense output store
    return tb


def temporal_attention(features, W, b, v, *, block_b=None):
    """features: (B, T, H); W: (H, H) [PyTorch Linear weight]; b: (H,); v: (H,)."""
    B, T, H = features.shape
    itemsize = jnp.dtype(features.dtype).itemsize

    Hp = _round_up(H, 128)   # lane-dense last dim
    Tp = _round_up(T, 8)     # sublane-dense flatten / no per-step relayout copy

    # ---- generation-specific VMEM budget + matching compiler limit ----------
    vmem_cap = _tpu_vmem_capacity_bytes()
    two_cores = vmem_cap <= 64 * 1024 * 1024        # v7x: 2 TCs, 64 MiB VMEM each
    vmem_limit = min(vmem_cap * 3 // 4,
                     (48 if two_cores else 96) * 1024 * 1024)
    resident = 2 * (Hp * Hp * 2 + 2 * Hp * 4)       # bf16 W^T + bias + v rows
    block_budget = max(1 << 20, (vmem_limit - resident) // 2)

    tb = block_b if block_b is not None else _choose_block_b(
        B, Tp, Hp, itemsize, block_budget, two_cores)

    n_blocks = pl.cdiv(B, tb)
    if two_cores and n_blocks > 1 and n_blocks % 2 == 1:
        n_blocks += 1                                # even split across the 2 TCs
    Bp = n_blocks * tb

    # ---- zero-pad to (Bp, Tp, Hp); padded lanes/rows are masked or sliced ----
    pads = ((0, Bp - B), (0, Tp - T), (0, Hp - H))
    if any(p[1] for p in pads):
        features = jnp.pad(features, pads)
    Wp = jnp.pad(W, ((0, Hp - H), (0, Hp - H)))
    wt = Wp.T.astype(jnp.bfloat16)                   # x @ wt == x @ W.T
    bp = jnp.pad(b, (0, Hp - H)).reshape(1, Hp).astype(jnp.float32)
    vp = jnp.pad(v, (0, Hp - H)).reshape(1, Hp).astype(jnp.float32)

    kernel = functools.partial(temporal_attention_kernel, t_valid=T)

    out = pl.pallas_call(
        kernel,
        out_shape=jax.ShapeDtypeStruct((Bp, Hp), features.dtype),
        grid_spec=pltpu.PrefetchScalarGridSpec(
            num_scalar_prefetch=0,
            grid=(n_blocks,),
            in_specs=[
                pl.BlockSpec((tb, Tp, Hp), lambda bi: (bi, 0, 0)),  # features
                pl.BlockSpec((Hp, Hp), lambda bi: (0, 0)),          # W^T (resident)
                pl.BlockSpec((1, Hp), lambda bi: (0, 0)),           # bias row
                pl.BlockSpec((1, Hp), lambda bi: (0, 0)),           # v row
            ],
            out_specs=pl.BlockSpec((tb, Hp), lambda bi: (bi, 0)),   # context
        ),
        compiler_params=pltpu.CompilerParams(
            dimension_semantics=("parallel",),
            vmem_limit_bytes=int(vmem_limit),
        ),
    )(features, wt, bp, vp)

    return out[:B, :H]


def temporal_attention_ref(features, W, b, v):
    """Pure-JAX reference mirroring the PyTorch forward."""
    uh = jnp.tanh(jnp.einsum("bth,oh->bto", features, W) + b)     # (B, T, H)
    scores = jnp.einsum("bth,h->bt", uh, v)                       # (B, T)
    attn = jax.nn.softmax(scores, axis=1)                         # (B, T)
    return jnp.einsum("bt,bth->bh", attn, features)               # (B, H)


def _check(B, T, H, key):
    k_x, k_w, k_b, k_v = jax.random.split(key, 4)
    features = jax.random.normal(k_x, (B, T, H), dtype=jnp.float32)
    bound = 1.0 / (H ** 0.5)
    W = jax.random.uniform(k_w, (H, H), minval=-bound, maxval=bound,
                           dtype=jnp.float32)                     # Linear weight
    b = jax.random.uniform(k_b, (H,), minval=-bound, maxval=bound,
                           dtype=jnp.float32)                     # Linear bias
    v = jax.random.uniform(k_v, (H,), minval=0.0, maxval=1.0,
                           dtype=jnp.float32)                     # torch.rand

    out = jax.block_until_ready(temporal_attention(features, W, b, v))
    ref = temporal_attention_ref(features, W, b, v)
    assert out.shape == (B, H)
    # bf16 MXU inputs + approx reciprocal => relaxed tolerance (perf review).
    err = jnp.max(jnp.abs(out - ref))
    assert jnp.allclose(out, ref, atol=5e-2, rtol=5e-2), f"max abs err = {err}"


if __name__ == "__main__":
    key = jax.random.PRNGKey(0)
    k0, k1 = jax.random.split(key)

    # Main case: shapes consistent with the module (seq=8, hidden=32).
    _check(B=8, T=8, H=32, key=k0)
    # Ragged case: exercises the batch / time / lane padding and the in-kernel
    # time-step mask.
    _check(B=5, T=5, H=32, key=k1)

    print("KERNEL_OK")
</pallas_src>

<mosaic_0001>
module attributes {stable_mosaic.version = 11 : i64} {
  func.func @temporal_attention_kernel(%arg0: i32, %arg1: memref<8x8x128xf32, #tpu.memory_space<vmem>>, %arg2: memref<128x128xbf16, #tpu.memory_space<vmem>>, %arg3: memref<1x128xf32, #tpu.memory_space<vmem>>, %arg4: memref<1x128xf32, #tpu.memory_space<vmem>>, %arg5: memref<8x128xf32, #tpu.memory_space<vmem>>) attributes {dimension_semantics = [#tpu.dimension_semantics<parallel>], iteration_bounds = array<i64: 1>, scalar_prefetch = 0 : i64, scratch_operands = 0 : i64, tpu.core_type = #tpu.core_type<tc>, window_params = [{transform_indices = @transform_0, window_bounds = array<i64: 8, 8, 128>}, {pipeline_mode = #tpu.pipeline_mode<synchronous>, transform_indices = @transform_1, window_bounds = array<i64: 128, 128>}, {pipeline_mode = #tpu.pipeline_mode<synchronous>, transform_indices = @transform_2, window_bounds = array<i64: 1, 128>}, {pipeline_mode = #tpu.pipeline_mode<synchronous>, transform_indices = @transform_3, window_bounds = array<i64: 1, 128>}, {transform_indices = @transform_4, window_bounds = array<i64: 8, 128>}]} {
    %c0 = arith.constant 0 : index
    %c0_0 = arith.constant 0 : index
    %c0_1 = arith.constant 0 : index
    %0 = vector.load %arg1[%c0, %c0_0, %c0_1] : memref<8x8x128xf32, #tpu.memory_space<vmem>>, vector<8x8x128xf32>
    %1 = vector.shape_cast %0 : vector<8x8x128xf32> to vector<64x128xf32>
    %2 = arith.truncf %1 : vector<64x128xf32> to vector<64x128xbf16>
    %c0_2 = arith.constant 0 : index
    %c0_3 = arith.constant 0 : index
    %3 = vector.load %arg2[%c0_2, %c0_3] : memref<128x128xbf16, #tpu.memory_space<vmem>>, vector<128x128xbf16>
    %cst = arith.constant dense<0.000000e+00> : vector<64x128xf32>
    %4 = tpu.matmul %2, %3, %cst {dimension_numbers = #tpu.dot_dimension_numbers<[1], [0], [0], [1], [0, 0, 1, 1], [], []>} : vector<64x128xbf16>, vector<128x128xbf16>, vector<64x128xf32> -> vector<64x128xf32>
    %c0_4 = arith.constant 0 : index
    %c0_5 = arith.constant 0 : index
    %5 = vector.load %arg3[%c0_4, %c0_5] : memref<1x128xf32, #tpu.memory_space<vmem>>, vector<1x128xf32>
    %6 = vector.broadcast %5 : vector<1x128xf32> to vector<64x128xf32>
    %7 = arith.addf %4, %6 : vector<64x128xf32>
    %8 = math.tanh %7 : vector<64x128xf32>
    %9 = vector.shape_cast %8 : vector<64x128xf32> to vector<8x8x128xf32>
    %c0_6 = arith.constant 0 : index
    %c0_7 = arith.constant 0 : index
    %10 = vector.load %arg4[%c0_6, %c0_7] : memref<1x128xf32, #tpu.memory_space<vmem>>, vector<1x128xf32>
    %11 = vector.shape_cast %10 : vector<1x128xf32> to vector<1x1x128xf32>
    %12 = vector.broadcast %11 : vector<1x1x128xf32> to vector<8x8x128xf32>
    %13 = arith.mulf %9, %12 : vector<8x8x128xf32>
    %cst_8 = arith.constant dense<0.000000e+00> : vector<8x8xf32>
    %14 = vector.multi_reduction <add>, %13, %cst_8 [2] : vector<8x8x128xf32> to vector<8x8xf32>
    %15 = vector.shape_cast %14 : vector<8x8xf32> to vector<8x8x1xf32>
    %cst_9 = arith.constant dense<0xFF800000> : vector<8x1xf32>
    %16 = vector.multi_reduction <maximumf>, %15, %cst_9 [1] : vector<8x8x1xf32> to vector<8x1xf32>
    %17 = vector.shape_cast %16 : vector<8x1xf32> to vector<8x1x1xf32>
    %18 = vector.broadcast %17 : vector<8x1x1xf32> to vector<8x8x1xf32>
    %19 = arith.subf %15, %18 : vector<8x8x1xf32>
    %20 = math.exp %19 : vector<8x8x1xf32>
    %cst_10 = arith.constant dense<0.000000e+00> : vector<8x1xf32>
    %21 = vector.multi_reduction <add>, %20, %cst_10 [1] : vector<8x8x1xf32> to vector<8x1xf32>
    %22 = vector.broadcast %20 : vector<8x8x1xf32> to vector<8x8x128xf32>
    %23 = arith.mulf %22, %0 : vector<8x8x128xf32>
    %cst_11 = arith.constant dense<0.000000e+00> : vector<8x128xf32>
    %24 = vector.multi_reduction <add>, %23, %cst_11 [1] : vector<8x8x128xf32> to vector<8x128xf32>
    %25 = tpu.reciprocal %21 {approx = true} : vector<8x1xf32> -> vector<8x1xf32>
    %26 = vector.broadcast %25 : vector<8x1xf32> to vector<8x128xf32>
    %27 = arith.mulf %24, %26 : vector<8x128xf32>
    %c0_12 = arith.constant 0 : index
    %c0_13 = arith.constant 0 : index
    %28 = vector.load %arg5[%c0_12, %c0_13] : memref<8x128xf32, #tpu.memory_space<vmem>>, vector<8x128xf32>
    tpu.vector_store %arg5[%c0_12, %c0_13], %27 {strides = array<i32>} : memref<8x128xf32, #tpu.memory_space<vmem>>, vector<8x128xf32>,
    return
  }
  func.func @transform_0(%arg0: i32) -> (i32, i32, i32) {
    %c0_i32 = arith.constant 0 : i32
    %c0_i32_0 = arith.constant 0 : i32
    %c0_i32_1 = arith.constant 0 : i32
    return %arg0, %c0_i32, %c0_i32_0 : i32, i32, i32
  }
  func.func @transform_1(%arg0: i32) -> (i32, i32) {
    %c0_i32 = arith.constant 0 : i32
    %c0_i32_0 = arith.constant 0 : i32
    %c0_i32_1 = arith.constant 0 : i32
    return %c0_i32, %c0_i32_0 : i32, i32
  }
  func.func @transform_2(%arg0: i32) -> (i32, i32) {
    %c0_i32 = arith.constant 0 : i32
    %c0_i32_0 = arith.constant 0 : i32
    %c0_i32_1 = arith.constant 0 : i32
    return %c0_i32, %c0_i32_0 : i32, i32
  }
  func.func @transform_3(%arg0: i32) -> (i32, i32) {
    %c0_i32 = arith.constant 0 : i32
    %c0_i32_0 = arith.constant 0 : i32
    %c0_i32_1 = arith.constant 0 : i32
    return %c0_i32, %c0_i32_0 : i32, i32
  }
  func.func @transform_4(%arg0: i32) -> (i32, i32) {
    %c0_i32 = arith.constant 0 : i32
    %c0_i32_0 = arith.constant 0 : i32
    return %arg0, %c0_i32 : i32, i32
  }
}

</mosaic_0001>

<llo_original>
// kernel: tpu_custom_call.1
$region0: #{tpu_custom_call.1}
  #allocation0 [shape = 'u32[]', space=smem, size = 0x4, offset = 0x4, fixed_abs, tag = 'smem constant byte address 0x4 - core index']
  #allocation1 [shape = 'u32[144,128]{1,0:T(1,128)}', space=vmem, size = 0x12000, scoped, tag = 'internal scratch']
  %s0 = inlined_call_operand.hbm [shape: f32[8,8,128], index: 0, kind: input, shape index: {}]
  %s1 = inlined_call_operand.hbm [shape: bf16[128,128], index: 1, kind: input, shape index: {}]
  %s2 = inlined_call_operand.vmem [shape: f32[1,128], index: 2, kind: input, shape index: {}]
  %s3 = inlined_call_operand.vmem [shape: f32[1,128], index: 3, kind: input, shape index: {}]
  %s4 = inlined_call_operand.hbm [shape: f32[8,128], index: 4, kind: output, shape index: {}]
  %s5 = sld [smem:[#allocation0]]
  $region34: #{tpu_custom_call.1} parent=0
    _
  %s7 = ssub.s32 1, %s5
  %s8 = scalar_select 0, %s7, %s5
  $region1: #{tpu_custom_call.1} parent=0
    #allocation2 [shape = 'u8[32768]{0}', space=vmem, size = 0x8000, scoped, tag = 'input window, operand 0, single buffered']
    #allocation3 [shape = 's32[1]{0}', space=sflag, size = 0x4, scoped, tag = 'scoped memory for tpu_custom_call.1']
    #allocation4 [shape = 's32[1]{0}', space=sflag, size = 0x4, scoped, tag = 'scoped memory for tpu_custom_call.1']
    #allocation5 [shape = 'u8[32768]{0}', space=vmem, size = 0x8000, scoped, tag = 'input window, operand 1, single buffered']
    #allocation6 [shape = 's32[1]{0}', space=sflag, size = 0x4, scoped, tag = 'scoped memory for tpu_custom_call.1']
    #allocation7 [shape = 'u8[4096]{0}', space=vmem, size = 0x1000, scoped, tag = 'output window, operand 0, single buffered']
    %9 = vsyncpa [#allocation3], 0
    %10 = vsyncpa [#allocation6], 0
    %11 = vsyncpa [#allocation4], 0
    // Predicated region
    $region2: #{tpu_custom_call.1} parent=1 // pred_check
      _
    $region3: #{tpu_custom_call.1} parent=1 // pred_check_branch
      %13 = sbr.rel (0) target = $region5
    $region4: #{tpu_custom_call.1} parent=1 // pred_region
      %s15 = ssub.s32 1024, 1024
      %16 = vsyncadd [#allocation3], %s15
      %s17 = sshll.u32 [#allocation2], 4
      %s18 = int_to_ptr.vmem [resolvable:$true] %s17
      %23 = dma.hbm_to_vmem [thread:$0]  %s0, 1024, %s18, [#allocation3], 128, 128, 8
    $region5: #{tpu_custom_call.1} parent=1 // pred_fallthru
      _
    // Predicated region
    $region6: #{tpu_custom_call.1} parent=1 // pred_check
      _
    $region7: #{tpu_custom_call.1} parent=1 // pred_check_branch
      %25 = sbr.rel (0) target = $region9
    $region8: #{tpu_custom_call.1} parent=1 // pred_region
      %s27 = ssub.s32 1024, 1024
      %28 = vsyncadd [#allocation6], %s27
      %s29 = sshll.u32 [#allocation5], 4
      %s30 = int_to_ptr.vmem [resolvable:$true] %s29
      %35 = dma.hbm_to_vmem [thread:$0]  %s1, 1024, %s30, [#allocation6], 64, 64, 4
    $region9: #{tpu_custom_call.1} parent=1 // pred_fallthru
      _
    // Predicated region
    $region10: #{tpu_custom_call.1} parent=1 // pred_check
      _
    $region11: #{tpu_custom_call.1} parent=1 // pred_check_branch
      %37 = sbr.rel (0) target = $region13
    $region12: #{tpu_custom_call.1} parent=1 // pred_region
      _
    $region13: #{tpu_custom_call.1} parent=1 // pred_fallthru
      _
    // Predicated region
    $region14: #{tpu_custom_call.1} parent=1 // pred_check
      _
    $region15: #{tpu_custom_call.1} parent=1 // pred_check_branch
      %39 = sbr.rel (0) target = $region17
    $region16: #{tpu_custom_call.1} parent=1 // pred_region
      _
    $region17: #{tpu_custom_call.1} parent=1 // pred_fallthru
      _
    // Predicated region
    $region18: #{tpu_custom_call.1} parent=1 // pred_check
      _
    $region19: #{tpu_custom_call.1} parent=1 // pred_check_branch
      %41 = sbr.rel (0) target = $region21
    $region20: #{tpu_custom_call.1} parent=1 // pred_region
      %42 = dma.done [#allocation3], 1024
    $region21: #{tpu_custom_call.1} parent=1 // pred_fallthru
      _
    // Predicated region
    $region22: #{tpu_custom_call.1} parent=1 // pred_check
      _
    $region23: #{tpu_custom_call.1} parent=1 // pred_check_branch
      %44 = sbr.rel (0) target = $region25
    $region24: #{tpu_custom_call.1} parent=1 // pred_region
      %45 = dma.done [#allocation6], 1024
    $region25: #{tpu_custom_call.1} parent=1 // pred_fallthru
      _
    %v47 = vld [vmem:[#allocation2] sm:$0xff]
    %v48 = vld [vmem:[#allocation2 + $0x8] sm:$0xff]
    %v49 = vld [vmem:[#allocation2 + $0x10] sm:$0xff]
    %v50 = vld [vmem:[#allocation2 + $0x18] sm:$0xff]
    %v51 = vld [vmem:[#allocation2 + $0x20] sm:$0xff]
    %v52 = vld [vmem:[#allocation2 + $0x28] sm:$0xff]
    %v53 = vld [vmem:[#allocation2 + $0x30] sm:$0xff]
    %v54 = vld [vmem:[#allocation2 + $0x38] sm:$0xff]
    %v55 = vpack.c.bf16 %v48, %v47
    %v56 = vpack.c.bf16 %v50, %v49
    %v57 = vpack.c.bf16 %v52, %v51
    %v58 = vpack.c.bf16 %v54, %v53
    %v59 = vld [vmem:[#allocation5] sm:$0xf]
    %v60 = vld [vmem:[#allocation5 + $0x4] sm:$0xf]
    %v61 = vld [vmem:[#allocation5 + $0x8] sm:$0xf]
    %v62 = vld [vmem:[#allocation5 + $0xc] sm:$0xf]
    %v63 = vld [vmem:[#allocation5 + $0x10] sm:$0xf]
    %v64 = vld [vmem:[#allocation5 + $0x14] sm:$0xf]
    %v65 = vld [vmem:[#allocation5 + $0x18] sm:$0xf]
    %v66 = vld [vmem:[#allocation5 + $0x1c] sm:$0xf]
    %v67 = vld [vmem:[#allocation5 + $0x20] sm:$0xf]
    %v68 = vld [vmem:[#allocation5 + $0x24] sm:$0xf]
    %v69 = vld [vmem:[#allocation5 + $0x28] sm:$0xf]
    %v70 = vld [vmem:[#allocation5 + $0x2c] sm:$0xf]
    %v71 = vld [vmem:[#allocation5 + $0x30] sm:$0xf]
    %v72 = vld [vmem:[#allocation5 + $0x34] sm:$0xf]
    %v73 = vld [vmem:[#allocation5 + $0x38] sm:$0xf]
    %v74 = vld [vmem:[#allocation5 + $0x3c] sm:$0xf]
    %v75 = vld [vmem:[%s2] sm:$0x1]
    %v77 = vlaneseq
    %v78 = vshrl.u32 %v77, 7
    %v79 = vsub.s32 0, %v78
    %v80 = vrot.slane %v75, %v79
    %v98 = vunpack.c.l.b16 %v59
    %v99 = vunpack.c.l.b16 %v60
    %v100 = vunpack.c.l.b16 %v61
    %v101 = vunpack.c.l.b16 %v62
    %v102 = vunpack.c.l.b16 %v63
    %v103 = vunpack.c.l.b16 %v64
    %v104 = vunpack.c.l.b16 %v65
    %v105 = vunpack.c.l.b16 %v66
    %v106 = vunpack.c.l.b16 %v67
    %v107 = vunpack.c.l.b16 %v68
    %v108 = vunpack.c.l.b16 %v69
    %v109 = vunpack.c.l.b16 %v70
    %v110 = vunpack.c.l.b16 %v71
    %v111 = vunpack.c.l.b16 %v72
    %v112 = vunpack.c.l.b16 %v73
    %v113 = vunpack.c.l.b16 %v74
    %v114 = vpack.c.b16 %v99, %v98
    %v115 = vpack.c.b16 %v101, %v100
    %v116 = vpack.c.b16 %v103, %v102
    %v117 = vpack.c.b16 %v105, %v104
    %v118 = vpack.c.b16 %v107, %v106
    %v119 = vpack.c.b16 %v109, %v108
    %v120 = vpack.c.b16 %v111, %v110
    %v121 = vpack.c.b16 %v113, %v112
    %130 = vmatprep.subr.bf16.mxu0 0
    %131 = vmatpush1.bf16.msra.mxu0 %v114
    %132 = vmatprep.subr.bf16.mxu0 0
    %133 = vmatpush1.bf16.msra.mxu0 %v115
    %134 = vmatprep.subr.bf16.mxu0 0
    %135 = vmatpush1.bf16.msra.mxu0 %v116
    %136 = vmatprep.subr.bf16.mxu0 0
    %137 = vmatpush1.bf16.msra.mxu0 %v117
    %138 = vmatprep.subr.bf16.mxu0 0
    %139 = vmatpush1.bf16.msra.mxu0 %v118
    %140 = vmatprep.subr.bf16.mxu0 0
    %141 = vmatpush1.bf16.msra.mxu0 %v119
    %142 = vmatprep.subr.bf16.mxu0 0
    %143 = vmatpush1.bf16.msra.mxu0 %v120
    %144 = vmatprep.subr.bf16.mxu0 0
    %145 = vmatpush1.bf16.msra.mxu0 %v121
    %146 = vmatprep.subr.bf16.mxu0 0
    %147 = vmatpush1.bf16.msra.mxu0 0
    %148 = vmatprep.subr.bf16.mxu0 0
    %149 = vmatpush1.bf16.msra.mxu0 0
    %150 = vmatprep.subr.bf16.mxu0 0
    %151 = vmatpush1.bf16.msra.mxu0 0
    %152 = vmatprep.subr.bf16.mxu0 0
    %153 = vmatpush1.bf16.msra.mxu0 0
    %154 = vmatprep.subr.bf16.mxu0 0
    %155 = vmatpush1.bf16.msra.mxu0 0
    %156 = vmatprep.subr.bf16.mxu0 0
    %157 = vmatpush1.bf16.msra.mxu0 0
    %158 = vmatprep.subr.bf16.mxu0 0
    %159 = vmatpush1.bf16.msra.mxu0 0
    %160 = vmatprep.subr.bf16.mxu0 0
    %161 = vmatpush1.bf16.msra.mxu0 0
    %162 = vmatprep.mubr.bf16.mxu0 0
    %163 = vmatmul.mubr.bf16.gmra.mrb[0].mxu0 %v55
    %v164 = vpop.f32.mrb[0].mxu0
    %v165 = vadd.f32 %v80, %v164
    %v166 = vpop.f32.mrb[0].mxu0
    %v167 = vpop.f32.mrb[0].mxu0
    %v168 = vadd.f32 %v80, %v167
    %v169 = vpop.f32.mrb[0].mxu0
    %170 = vmatprep.mubr.bf16.mxu0 0
    %171 = vmatmul.mubr.bf16.gmra.mrb[0].mxu0 %v56
    %v172 = vpop.f32.mrb[0].mxu0
    %v173 = vadd.f32 %v80, %v172
    %v174 = vpop.f32.mrb[0].mxu0
    %v175 = vpop.f32.mrb[0].mxu0
    %v176 = vadd.f32 %v80, %v175
    %v177 = vpop.f32.mrb[0].mxu0
    %178 = vmatprep.mubr.bf16.mxu0 0
    %179 = vmatmul.mubr.bf16.gmra.mrb[0].mxu0 %v57
    %v180 = vpop.f32.mrb[0].mxu0
    %v181 = vadd.f32 %v80, %v180
    %v182 = vpop.f32.mrb[0].mxu0
    %v183 = vpop.f32.mrb[0].mxu0
    %v184 = vadd.f32 %v80, %v183
    %v185 = vpop.f32.mrb[0].mxu0
    %186 = vmatprep.mubr.bf16.mxu0 0
    %187 = vmatmul.mubr.bf16.gmra.mrb[0].mxu0 %v58
    %v188 = vpop.f32.mrb[0].mxu0
    %v189 = vadd.f32 %v80, %v188
    %v190 = vpop.f32.mrb[0].mxu0
    %v191 = vpop.f32.mrb[0].mxu0
    %v192 = vadd.f32 %v80, %v191
    %v193 = vpop.f32.mrb[0].mxu0
    %194 = vdwg.mxu0
    %v195 = vtanh.pop %v165
    %v196 = vtanh.pop %v168
    %v197 = vtanh.pop %v173
    %v198 = vtanh.pop %v176
    %v199 = vtanh.pop %v181
    %v200 = vtanh.pop %v184
    %v201 = vtanh.pop %v189
    %v202 = vtanh.pop %v192
    %v203 = vld [vmem:[%s3] sm:$0x1]
    %v205 = vlaneseq
    %v206 = vshrl.u32 %v205, 7
    %v207 = vsub.s32 0, %v206
    %v208 = vrot.slane %v203, %v207
    %v210 = vmul.f32 %v195, %v208
    %v211 = vmul.f32 %v196, %v208
    %v212 = vmul.f32 %v197, %v208
    %v213 = vmul.f32 %v198, %v208
    %v214 = vmul.f32 %v199, %v208
    %v215 = vmul.f32 %v200, %v208
    %v216 = vmul.f32 %v201, %v208
    %v217 = vmul.f32 %v202, %v208
    %218 = vadd.xlane.f32.xlu0 %v210
    %v219 = vpop.xlane.xlu0 %218
    %220 = vadd.xlane.f32.xlu0 %v211
    %v221 = vpop.xlane.xlu0 %220
    %222 = vadd.xlane.f32.xlu0 %v212
    %v223 = vpop.xlane.xlu0 %222
    %224 = vadd.xlane.f32.xlu0 %v213
    %v225 = vpop.xlane.xlu0 %224
    %226 = vadd.xlane.f32.xlu0 %v214
    %v227 = vpop.xlane.xlu0 %226
    %228 = vadd.xlane.f32.xlu0 %v215
    %v229 = vpop.xlane.xlu0 %228
    %230 = vadd.xlane.f32.xlu0 %v216
    %v231 = vpop.xlane.xlu0 %230
    %232 = vadd.xlane.f32.xlu0 %v217
    %v233 = vpop.xlane.xlu0 %232
    %v234 = vrot.slane %v219, 4
    %v235 = vmax.f32 %v219, %v234
    %v236 = vrot.slane %v235, 2
    %v237 = vmax.f32 %v235, %v236
    %v238 = vrot.slane %v237, 1
    %v239 = vmax.f32 %v237, %v238
    %v240 = vrot.slane %v221, 4
    %v241 = vmax.f32 %v221, %v240
    %v242 = vrot.slane %v241, 2
    %v243 = vmax.f32 %v241, %v242
    %v244 = vrot.slane %v243, 1
    %v245 = vmax.f32 %v243, %v244
    %v246 = vrot.slane %v223, 4
    %v247 = vmax.f32 %v223, %v246
    %v248 = vrot.slane %v247, 2
    %v249 = vmax.f32 %v247, %v248
    %v250 = vrot.slane %v249, 1
    %v251 = vmax.f32 %v249, %v250
    %v252 = vrot.slane %v225, 4
    %v253 = vmax.f32 %v225, %v252
    %v254 = vrot.slane %v253, 2
    %v255 = vmax.f32 %v253, %v254
    %v256 = vrot.slane %v255, 1
    %v257 = vmax.f32 %v255, %v256
    %v258 = vrot.slane %v227, 4
    %v259 = vmax.f32 %v227, %v258
    %v260 = vrot.slane %v259, 2
    %v261 = vmax.f32 %v259, %v260
    %v262 = vrot.slane %v261, 1
    %v263 = vmax.f32 %v261, %v262
    %v264 = vrot.slane %v229, 4
    %v265 = vmax.f32 %v229, %v264
    %v266 = vrot.slane %v265, 2
    %v267 = vmax.f32 %v265, %v266
    %v268 = vrot.slane %v267, 1
    %v269 = vmax.f32 %v267, %v268
    %v270 = vrot.slane %v231, 4
    %v271 = vmax.f32 %v231, %v270
    %v272 = vrot.slane %v271, 2
    %v273 = vmax.f32 %v271, %v272
    %v274 = vrot.slane %v273, 1
    %v275 = vmax.f32 %v273, %v274
    %v276 = vrot.slane %v233, 4
    %v277 = vmax.f32 %v233, %v276
    %v278 = vrot.slane %v277, 2
    %v279 = vmax.f32 %v277, %v278
    %v280 = vrot.slane %v279, 1
    %v281 = vmax.f32 %v279, %v280
    %v282 = vsub.f32 %v219, %v239
    %v283 = vsub.f32 %v221, %v245
    %v284 = vsub.f32 %v223, %v251
    %v285 = vsub.f32 %v225, %v257
    %v286 = vsub.f32 %v227, %v263
    %v287 = vsub.f32 %v229, %v269
    %v288 = vsub.f32 %v231, %v275
    %v289 = vsub.f32 %v233, %v281
    %v290 = vmul.f32 %v282, 1.442695
    %v291 = vpow.pop %v290
    %v292 = vmul.f32 %v283, 1.442695
    %v293 = vpow.pop %v292
    %v294 = vmul.f32 %v284, 1.442695
    %v295 = vpow.pop %v294
    %v296 = vmul.f32 %v285, 1.442695
    %v297 = vpow.pop %v296
    %v298 = vmul.f32 %v286, 1.442695
    %v299 = vpow.pop %v298
    %v300 = vmul.f32 %v287, 1.442695
    %v301 = vpow.pop %v300
    %v302 = vmul.f32 %v288, 1.442695
    %v303 = vpow.pop %v302
    %v304 = vmul.f32 %v289, 1.442695
    %v305 = vpow.pop %v304
    %v306 = vrot.slane %v291, 4
    %v307 = vadd.f32 %v291, %v306
    %v308 = vrot.slane %v307, 2
    %v309 = vadd.f32 %v307, %v308
    %v310 = vrot.slane %v309, 1
    %v311 = vadd.f32 %v309, %v310
    %v312 = vrot.slane %v293, 4
    %v313 = vadd.f32 %v293, %v312
    %v314 = vrot.slane %v313, 2
    %v315 = vadd.f32 %v313, %v314
    %v316 = vrot.slane %v315, 1
    %v317 = vadd.f32 %v315, %v316
    %v318 = vrot.slane %v295, 4
    %v319 = vadd.f32 %v295, %v318
    %v320 = vrot.slane %v319, 2
    %v321 = vadd.f32 %v319, %v320
    %v322 = vrot.slane %v321, 1
    %v323 = vadd.f32 %v321, %v322
    %v324 = vrot.slane %v297, 4
    %v325 = vadd.f32 %v297, %v324
    %v326 = vrot.slane %v325, 2
    %v327 = vadd.f32 %v325, %v326
    %v328 = vrot.slane %v327, 1
    %v329 = vadd.f32 %v327, %v328
    %v330 = vrot.slane %v299, 4
    %v331 = vadd.f32 %v299, %v330
    %v332 = vrot.slane %v331, 2
    %v333 = vadd.f32 %v331, %v332
    %v334 = vrot.slane %v333, 1
    %v335 = vadd.f32 %v333, %v334
    %v336 = vrot.slane %v301, 4
    %v337 = vadd.f32 %v301, %v336
    %v338 = vrot.slane %v337, 2
    %v339 = vadd.f32 %v337, %v338
    %v340 = vrot.slane %v339, 1
    %v341 = vadd.f32 %v339, %v340
    %v342 = vrot.slane %v303, 4
    %v343 = vadd.f32 %v303, %v342
    %v344 = vrot.slane %v343, 2
    %v345 = vadd.f32 %v343, %v344
    %v346 = vrot.slane %v345, 1
    %v347 = vadd.f32 %v345, %v346
    %v348 = vrot.slane %v305, 4
    %v349 = vadd.f32 %v305, %v348
    %v350 = vrot.slane %v349, 2
    %v351 = vadd.f32 %v349, %v350
    %v352 = vrot.slane %v351, 1
    %v353 = vadd.f32 %v351, %v352
    %v354 = vmul.f32 %v291, %v47
    %v355 = vmul.f32 %v293, %v48
    %v356 = vmul.f32 %v295, %v49
    %v357 = vmul.f32 %v297, %v50
    %v358 = vmul.f32 %v299, %v51
    %v359 = vmul.f32 %v301, %v52
    %v360 = vmul.f32 %v303, %v53
    %v361 = vmul.f32 %v305, %v54
    %v362 = vrot.slane %v354, 4
    %v363 = vadd.f32 %v354, %v362
    %v364 = vrot.slane %v363, 2
    %v365 = vadd.f32 %v363, %v364
    %v366 = vrot.slane %v365, 1
    %v367 = vadd.f32 %v365, %v366
    %v368 = vrot.slane %v355, 4
    %v369 = vadd.f32 %v355, %v368
    %v370 = vrot.slane %v369, 2
    %v371 = vadd.f32 %v369, %v370
    %v372 = vrot.slane %v371, 1
    %v373 = vadd.f32 %v371, %v372
    %v374 = vrot.slane %v356, 4
    %v375 = vadd.f32 %v356, %v374
    %v376 = vrot.slane %v375, 2
    %v377 = vadd.f32 %v375, %v376
    %v378 = vrot.slane %v377, 1
    %v379 = vadd.f32 %v377, %v378
    %v380 = vrot.slane %v357, 4
    %v381 = vadd.f32 %v357, %v380
    %v382 = vrot.slane %v381, 2
    %v383 = vadd.f32 %v381, %v382
    %v384 = vrot.slane %v383, 1
    %v385 = vadd.f32 %v383, %v384
    %v386 = vrot.slane %v358, 4
    %v387 = vadd.f32 %v358, %v386
    %v388 = vrot.slane %v387, 2
    %v389 = vadd.f32 %v387, %v388
    %v390 = vrot.slane %v389, 1
    %v391 = vadd.f32 %v389, %v390
    %v392 = vrot.slane %v359, 4
    %v393 = vadd.f32 %v359, %v392
    %v394 = vrot.slane %v393, 2
    %v395 = vadd.f32 %v393, %v394
    %v396 = vrot.slane %v395, 1
    %v397 = vadd.f32 %v395, %v396
    %v398 = vrot.slane %v360, 4
    %v399 = vadd.f32 %v360, %v398
    %v400 = vrot.slane %v399, 2
    %v401 = vadd.f32 %v399, %v400
    %v402 = vrot.slane %v401, 1
    %v403 = vadd.f32 %v401, %v402
    %v404 = vrot.slane %v361, 4
    %v405 = vadd.f32 %v361, %v404
    %v406 = vrot.slane %v405, 2
    %v407 = vadd.f32 %v405, %v406
    %v408 = vrot.slane %v407, 1
    %v409 = vadd.f32 %v407, %v408
    %v410 = vrcp.pop %v311
    %v411 = vrcp.pop %v317
    %v412 = vrcp.pop %v323
    %v413 = vrcp.pop %v329
    %v414 = vrcp.pop %v335
    %v415 = vrcp.pop %v341
    %v416 = vrcp.pop %v347
    %v417 = vrcp.pop %v353
    %v418 = vmul.f32 %v367, %v410
    %v419 = vmul.f32 %v373, %v411
    %v420 = vmul.f32 %v379, %v412
    %v421 = vmul.f32 %v385, %v413
    %v422 = vmul.f32 %v391, %v414
    %v423 = vmul.f32 %v397, %v415
    %v424 = vmul.f32 %v403, %v416
    %v425 = vmul.f32 %v409, %v417
    %vm434 = vcmask 1041409
    %v435 = vsel %vm434, %v419, %v418
    %vm436 = vcmask 1042434
    %v437 = vsel %vm436, %v420, %v435
    %vm438 = vcmask 1043459
    %v439 = vsel %vm438, %v421, %v437
    %vm440 = vcmask 1044484
    %v441 = vsel %vm440, %v422, %v439
    %vm442 = vcmask 1045509
    %v443 = vsel %vm442, %v423, %v441
    %vm444 = vcmask 1046534
    %v445 = vsel %vm444, %v424, %v443
    %vm446 = vcmask 1047559
    %v447 = vsel %vm446, %v425, %v445
    %449 = vst [vmem:[#allocation7] sm:$0xff] %v447
    // Predicated region
    $region26: #{tpu_custom_call.1} parent=1 // pred_check
      _
    $region27: #{tpu_custom_call.1} parent=1 // pred_check_branch
      %451 = sbr.rel (0) target = $region29
    $region28: #{tpu_custom_call.1} parent=1 // pred_region
      %s453 = ssub.s32 128, 128
      %454 = vsyncadd [#allocation4], %s453
      %s456 = sshll.u32 [#allocation7], 4
      %s457 = int_to_ptr.vmem [resolvable:$true] %s456
      %459 = dma.vmem_to_hbm [thread:$0]  %s457, 128, %s4, [#allocation4]
    $region29: #{tpu_custom_call.1} parent=1 // pred_fallthru
      _
    // Predicated region
    $region30: #{tpu_custom_call.1} parent=1 // pred_check
      _
    $region31: #{tpu_custom_call.1} parent=1 // pred_check_branch
      %461 = sbr.rel (0) target = $region33
    $region32: #{tpu_custom_call.1} parent=1 // pred_region
      %462 = dma.done [#allocation4], 128
    $region33: #{tpu_custom_call.1} parent=1 // pred_fallthru
      _
    %463 = vsyncpa [#allocation3], 1
    %464 = vsyncpa [#allocation6], 1
    %465 = vsyncpa [#allocation4], 1

</llo_original>
